<compile_context>
chip_gen: v7x
topology: tpu7x:2x2x1
jax: 0.10.0
libtpu: 0.0.40
codegen_flags: <defaults>
</compile_context>

<pallas_src>
import jax
import jax.numpy as jnp
import numpy as np
from jax.experimental import pallas as pl
from jax.experimental.pallas import tpu as pltpu


def _chomp_kernel(x_ref, o_ref):
    # x_ref: (tile_rows, T) VMEM view, o_ref: (tile_rows, T - chomp) VMEM view.
    # Static lane slice of the loaded tile -> lane-dense store of the output tile.
    o_ref[...] = x_ref[:, : o_ref.shape[-1]]


def _row_tile(rows, cap=1024):
    """Largest row-tile that divides `rows`, is a multiple of 8, and is <= cap."""
    if rows % 8 != 0 or rows <= 8:
        return rows                      # full-extent block (single grid step) is always legal
    t = min(rows - rows % 8, cap)
    t -= t % 8
    while rows % t != 0:
        t -= 8
    return t


def chomp1d(x, chomp_size):
    """Pallas equivalent of Chomp1d.forward: x[:, :, :-chomp_size].contiguous()."""
    assert chomp_size > 0, "Chomp1d is only meaningful for chomp_size > 0"
    B, C, T = x.shape
    t_out = T - chomp_size
    assert t_out > 0, "chomp_size must be smaller than the temporal length"

    rows = B * C
    x2d = x.reshape(rows, T)             # chomped axis on lanes, (B, C) folded onto sublanes
    tile = _row_tile(rows)
    grid = (rows // tile,)

    out2d = pl.pallas_call(
        _chomp_kernel,
        out_shape=jax.ShapeDtypeStruct((rows, t_out), x.dtype),
        grid_spec=pltpu.PrefetchScalarGridSpec(
            num_scalar_prefetch=0,
            grid=grid,
            # Input keeps the full T extent (last dim == full array dim, always legal);
            # output last dim == full output extent for the same reason.
            in_specs=[pl.BlockSpec((tile, T), lambda i: (i, 0))],
            out_specs=pl.BlockSpec((tile, t_out), lambda i: (i, 0)),
        ),
        compiler_params=pltpu.CompilerParams(
            dimension_semantics=("parallel",)),   # row tiles are independent (megacore-friendly)
    )(x2d)
    return out2d.reshape(B, C, t_out)


# ----------------------------------------------------------------------------
# Pure-JAX reference (the module's math) for a correctness check
# ----------------------------------------------------------------------------
def reference(x, chomp_size):
    return x[:, :, :-chomp_size]


if __name__ == "__main__":
    # Small shapes consistent with a TCN-style Conv1d output feeding Chomp1d:
    # batch=2, channels=4, temporal length=16, chomp_size=(kernel_size-1)*dilation=2.
    B, C, T, CHOMP = 2, 4, 16, 2

    key = jax.random.PRNGKey(0)
    x = jax.random.normal(key, (B, C, T), dtype=jnp.float32)

    fwd = jax.jit(chomp1d, static_argnums=1)
    y = jax.block_until_ready(fwd(x, CHOMP))

    assert y.shape == (B, C, T - CHOMP) and y.dtype == x.dtype
    y_ref = jax.block_until_ready(reference(x, CHOMP))
    np.testing.assert_array_equal(np.asarray(y), np.asarray(y_ref))

    print("KERNEL_OK")
</pallas_src>

<mosaic_0001>
module attributes {stable_mosaic.version = 11 : i64} {
  func.func @_chomp_kernel(%arg0: i32, %arg1: memref<8x16xf32, #tpu.memory_space<vmem>>, %arg2: memref<8x14xf32, #tpu.memory_space<vmem>>) attributes {dimension_semantics = [#tpu.dimension_semantics<parallel>], iteration_bounds = array<i64: 1>, scalar_prefetch = 0 : i64, scratch_operands = 0 : i64, tpu.core_type = #tpu.core_type<tc>, window_params = [{transform_indices = @transform_0, window_bounds = array<i64: 8, 16>}, {transform_indices = @transform_1, window_bounds = array<i64: 8, 14>}]} {
    %c0 = arith.constant 0 : index
    %c0_0 = arith.constant 0 : index
    %0 = vector.load %arg1[%c0, %c0_0] : memref<8x16xf32, #tpu.memory_space<vmem>>, vector<8x14xf32>
    %c0_1 = arith.constant 0 : index
    %c0_2 = arith.constant 0 : index
    %1 = vector.load %arg2[%c0_1, %c0_2] : memref<8x14xf32, #tpu.memory_space<vmem>>, vector<8x14xf32>
    tpu.vector_store %arg2[%c0_1, %c0_2], %0 {strides = array<i32>} : memref<8x14xf32, #tpu.memory_space<vmem>>, vector<8x14xf32>,
    return
  }
  func.func @transform_0(%arg0: i32) -> (i32, i32) {
    %c0_i32 = arith.constant 0 : i32
    %c0_i32_0 = arith.constant 0 : i32
    return %arg0, %c0_i32 : i32, i32
  }
  func.func @transform_1(%arg0: i32) -> (i32, i32) {
    %c0_i32 = arith.constant 0 : i32
    %c0_i32_0 = arith.constant 0 : i32
    return %arg0, %c0_i32 : i32, i32
  }
}

</mosaic_0001>

<llo_original>
// kernel: chomp1d.1
$region0: #{chomp1d.1}
  #allocation0 [shape = 'u32[]', space=smem, size = 0x4, offset = 0x4, fixed_abs, tag = 'smem constant byte address 0x4 - core index']
  #allocation1 [shape = 'u32[144,128]{1,0:T(1,128)}', space=vmem, size = 0x12000, scoped, tag = 'internal scratch']
  %s0 = inlined_call_operand.hbm [shape: f32[8,16], index: 0, kind: input, shape index: {}]
  %s1 = inlined_call_operand.hbm [shape: f32[8,14], index: 1, kind: output, shape index: {}]
  %s2 = sld [smem:[#allocation0]]
  $region18: #{chomp1d.1} parent=0
    _
  %s4 = ssub.s32 1, %s2
  %s5 = scalar_select 0, %s4, %s2
  $region1: #{chomp1d.1} parent=0
    #allocation2 [shape = 'u8[4096]{0}', space=vmem, size = 0x1000, scoped, tag = 'input window, operand 0, single buffered']
    #allocation3 [shape = 's32[1]{0}', space=sflag, size = 0x4, scoped, tag = 'scoped memory for chomp1d.1']
    #allocation4 [shape = 's32[1]{0}', space=sflag, size = 0x4, scoped, tag = 'scoped memory for chomp1d.1']
    #allocation5 [shape = 'u8[4096]{0}', space=vmem, size = 0x1000, scoped, tag = 'output window, operand 0, single buffered']
    %6 = vsyncpa [#allocation3], 0
    %7 = vsyncpa [#allocation4], 0
    // Predicated region
    $region2: #{chomp1d.1} parent=1 // pred_check
      _
    $region3: #{chomp1d.1} parent=1 // pred_check_branch
      %9 = sbr.rel (0) target = $region5
    $region4: #{chomp1d.1} parent=1 // pred_region
      %s11 = ssub.s32 128, 128
      %12 = vsyncadd [#allocation3], %s11
      %s14 = sshll.u32 [#allocation2], 4
      %s15 = int_to_ptr.vmem [resolvable:$true] %s14
      %17 = dma.hbm_to_vmem [thread:$0]  %s0, 128, %s15, [#allocation3]
    $region5: #{chomp1d.1} parent=1 // pred_fallthru
      _
    // Predicated region
    $region6: #{chomp1d.1} parent=1 // pred_check
      _
    $region7: #{chomp1d.1} parent=1 // pred_check_branch
      %19 = sbr.rel (0) target = $region9
    $region8: #{chomp1d.1} parent=1 // pred_region
      %20 = dma.done [#allocation3], 128
    $region9: #{chomp1d.1} parent=1 // pred_fallthru
      _
    %v21 = vld [vmem:[#allocation2] sm:$0xff]
    %vm22 = vcmask 113664
    %23 = vst.msk [vmem:[#allocation5] sm:$0xff] %vm22, %v21
    // Predicated region
    $region10: #{chomp1d.1} parent=1 // pred_check
      _
    $region11: #{chomp1d.1} parent=1 // pred_check_branch
      %25 = sbr.rel (0) target = $region13
    $region12: #{chomp1d.1} parent=1 // pred_region
      %s27 = ssub.s32 128, 128
      %28 = vsyncadd [#allocation4], %s27
      %s30 = sshll.u32 [#allocation5], 4
      %s31 = int_to_ptr.vmem [resolvable:$true] %s30
      %33 = dma.vmem_to_hbm [thread:$0]  %s31, 128, %s1, [#allocation4]
    $region13: #{chomp1d.1} parent=1 // pred_fallthru
      _
    // Predicated region
    $region14: #{chomp1d.1} parent=1 // pred_check
      _
    $region15: #{chomp1d.1} parent=1 // pred_check_branch
      %35 = sbr.rel (0) target = $region17
    $region16: #{chomp1d.1} parent=1 // pred_region
      %36 = dma.done [#allocation4], 128
    $region17: #{chomp1d.1} parent=1 // pred_fallthru
      _
    %37 = vsyncpa [#allocation3], 1
    %38 = vsyncpa [#allocation4], 1

</llo_original>
